<compile_context>
chip_gen: v7x
topology: tpu7x:2x2x1
jax: 0.10.0
libtpu: 0.0.40
codegen_flags: <defaults>
</compile_context>

<pallas_src>
import jax
import jax.numpy as jnp
from jax import lax
from jax.experimental import pallas as pl
from jax.experimental.pallas import tpu as pltpu


def _round_up(x, m):
    return ((x + m - 1) // m) * m


def _scatter_mean_kernel(counts_ref, first_ref, last_ref,
                         dst_idx_ref, msg_ref, dst_emb_ref,
                         alpha_mask_ref, inv_deg_ref, out_ref):
    # counts_ref    : (nd*ne,) int32 SMEM  edges per (dst tile, edge tile)
    # first_ref     : (nd,)    int32 SMEM  first edge tile per dst tile (index_map only)
    # last_ref      : (nd,)    int32 SMEM  last  edge tile per dst tile (index_map only)
    # dst_idx_ref   : (1, tE)  int32       edge -> dst node id (-1 = pad), sorted by dst
    # msg_ref       : (tE, D)  bf16        per-edge message tile (src_emb[src] + edge_emb)
    # dst_emb_ref   : (tN, D)  f32         destination-embedding tile
    # alpha_mask_ref: (tN, 1)  f32         alpha where deg>0 else 0
    # inv_deg_ref   : (tN, 1)  f32         (1-alpha)/deg where deg>0 else 0
    # out_ref       : (tN, D)  f32         output tile; doubles as the scatter-sum accumulator
    del first_ref, last_ref
    i = pl.program_id(0)
    j = pl.program_id(1)
    n_edge_tiles = pl.num_programs(1)

    @pl.when(j == 0)
    def _():
        out_ref[...] = jnp.zeros_like(out_ref)

    @pl.when(counts_ref[i * n_edge_tiles + j] > 0)
    def _():
        t_n = out_ref.shape[0]
        t_e = dst_idx_ref.shape[1]
        dst_base = i * t_n
        # Scatter one-hot on the VPU: base-0 iota vs. (dst - base), emitted as bf16.
        local_dst = dst_idx_ref[...] - dst_base                         # (1, tE)
        row_iota = lax.broadcasted_iota(jnp.int32, (t_n, t_e), 0)
        scatter_oh = (row_iota == local_dst).astype(jnp.bfloat16)       # (tN, tE)
        # bf16 x bf16 MXU dot, f32 accumulation directly into the output block.
        out_ref[...] += jnp.dot(scatter_oh, msg_ref[...],
                                preferred_element_type=jnp.float32)

    @pl.when(j == n_edge_tiles - 1)
    def _():
        # out = alpha * dst + (1 - alpha) * mean(msg)   (0 where in-degree == 0)
        out_ref[...] = (alpha_mask_ref[...] * dst_emb_ref[...]
                        + inv_deg_ref[...] * out_ref[...])


def mul_layer(src_idx, dst_idx, src_emb, dst_emb, edge_emb, alpha=0.3,
              *, tile_e=512, tile_dst=512):
    """src_idx/dst_idx: (E,) int32 edge endpoints; embeddings (N, D) float32."""
    n_src, d = src_emb.shape
    n_dst, _ = dst_emb.shape
    e = edge_emb.shape[0]
    f32 = jnp.float32

    # --- gather hoisted out of the grid: per-edge message via plain XLA ------
    msg = src_emb.astype(f32)[src_idx] + edge_emb.astype(f32)            # (E, D)

    # --- sort edges by destination so each dst tile owns a contiguous range
    #     of edge tiles (enables per-tile skip + no redundant HBM streaming) --
    order = jnp.argsort(dst_idx)
    msg_sorted = msg[order].astype(jnp.bfloat16)
    dst_sorted = dst_idx[order].astype(jnp.int32)

    # --- tiling plan (lane-dense D, MXU-friendly contraction width) ----------
    d_p = _round_up(d, 128)
    t_e = min(tile_e, _round_up(e, 128))
    t_n = min(tile_dst, _round_up(n_dst, 8))
    if _round_up(n_dst, t_n) // t_n < 2 and n_dst > 8:
        # make sure both v7x TensorCores get a dst tile
        t_n = _round_up((n_dst + 1) // 2, 8)
    e_p = _round_up(e, t_e)
    n_dst_p = _round_up(n_dst, t_n)
    n_edge_tiles = e_p // t_e
    n_dst_tiles = n_dst_p // t_n

    # --- padded operands ------------------------------------------------------
    msg_p = jnp.zeros((e_p, d_p), jnp.bfloat16).at[:e, :d].set(msg_sorted)
    # padded edges get dst = -1 so they never match any destination row
    dst_idx_row = jnp.full((1, e_p), -1, jnp.int32).at[0, :e].set(dst_sorted)
    dst_emb_p = jnp.zeros((n_dst_p, d_p), f32).at[:n_dst, :d].set(dst_emb.astype(f32))

    # --- per-dst degree -> precomputed masked blend factors -------------------
    deg = jnp.zeros((n_dst_p,), f32).at[dst_idx.astype(jnp.int32)].add(1.0)
    has_msg = deg > 0
    alpha_mask = jnp.where(has_msg, jnp.float32(alpha), 0.0)[:, None]     # (Nd, 1)
    inv_deg = jnp.where(has_msg, (1.0 - alpha) / jnp.where(has_msg, deg, 1.0),
                        0.0)[:, None]                                     # (Nd, 1)

    # --- per-(dst tile, edge tile) occupancy table for tile skipping ----------
    edge_pos = jnp.arange(e_p, dtype=jnp.int32)
    valid = edge_pos < e
    dst_full = jnp.zeros((e_p,), jnp.int32).at[:e].set(dst_sorted)
    dst_tile_of_edge = jnp.where(valid, dst_full // t_n, 0)
    edge_tile_of_edge = edge_pos // t_e
    flat_idx = dst_tile_of_edge * n_edge_tiles + edge_tile_of_edge
    counts = jnp.zeros((n_dst_tiles * n_edge_tiles,), jnp.int32).at[flat_idx].add(
        valid.astype(jnp.int32))
    counts2d = counts.reshape(n_dst_tiles, n_edge_tiles)
    has_any = jnp.any(counts2d > 0, axis=1)
    first_tile = jnp.where(has_any, jnp.argmax(counts2d > 0, axis=1),
                           0).astype(jnp.int32)
    last_tile = jnp.where(has_any,
                          n_edge_tiles - 1 - jnp.argmax((counts2d > 0)[:, ::-1], axis=1),
                          0).astype(jnp.int32)

    grid = (n_dst_tiles, n_edge_tiles)

    def _edge_tile(i, j, counts_ref, first_ref, last_ref):
        # Hold the msg / dst-index tile within this dst tile's edge range so
        # skipped (i, j) steps never re-fetch from HBM.
        del counts_ref
        return jnp.clip(j, first_ref[i], last_ref[i])

    out_p = pl.pallas_call(
        _scatter_mean_kernel,
        out_shape=jax.ShapeDtypeStruct((n_dst_p, d_p), f32),
        grid_spec=pltpu.PrefetchScalarGridSpec(
            num_scalar_prefetch=3,
            grid=grid,
            in_specs=[
                pl.BlockSpec((1, t_e),
                             lambda i, j, c, f, l: (0, _edge_tile(i, j, c, f, l))),
                pl.BlockSpec((t_e, d_p),
                             lambda i, j, c, f, l: (_edge_tile(i, j, c, f, l), 0)),
                pl.BlockSpec((t_n, d_p), lambda i, j, c, f, l: (i, 0)),   # dst_emb tile
                pl.BlockSpec((t_n, 1), lambda i, j, c, f, l: (i, 0)),     # alpha mask
                pl.BlockSpec((t_n, 1), lambda i, j, c, f, l: (i, 0)),     # (1-alpha)/deg
            ],
            out_specs=pl.BlockSpec((t_n, d_p), lambda i, j, c, f, l: (i, 0)),
        ),
        compiler_params=pltpu.CompilerParams(
            dimension_semantics=("parallel", "arbitrary"),
            vmem_limit_bytes=48 * 1024 * 1024,
        ),
    )(counts, first_tile, last_tile, dst_idx_row, msg_p, dst_emb_p,
      alpha_mask, inv_deg)

    return out_p[:n_dst, :d]


def mul_layer_ref(src_idx, dst_idx, src_emb, dst_emb, edge_emb, alpha=0.3):
    """Pure-JAX reference mirroring the DGL update_all semantics."""
    n_dst, d = dst_emb.shape
    msg = src_emb[src_idx] + edge_emb                                   # (E, D)
    agg_sum = jnp.zeros((n_dst, d), jnp.float32).at[dst_idx].add(msg)
    deg = jnp.zeros((n_dst,), jnp.float32).at[dst_idx].add(1.0)
    has_msg = deg > 0
    agg = agg_sum / jnp.where(has_msg, deg, 1.0)[:, None]
    out = alpha * dst_emb + (1.0 - alpha) * agg
    return jnp.where(has_msg[:, None], out, 0.0)


if __name__ == "__main__":
    key = jax.random.PRNGKey(0)
    k1, k2, k3, k4, k5 = jax.random.split(key, 5)

    n_src, n_dst, n_edges, dim = 16, 16, 300, 32

    src_emb = jax.random.normal(k1, (n_src, dim), dtype=jnp.float32)
    dst_emb = jax.random.normal(k2, (n_dst, dim), dtype=jnp.float32)
    edge_emb = jax.random.normal(k3, (n_edges, dim), dtype=jnp.float32)
    src_idx = jax.random.randint(k4, (n_edges,), 0, n_src, dtype=jnp.int32)
    dst_idx = jax.random.randint(k5, (n_edges,), 0, n_dst, dtype=jnp.int32)

    # small tiles so the multi-tile (dst x edge) skip / redirect path is exercised
    out = mul_layer(src_idx, dst_idx, src_emb, dst_emb, edge_emb,
                    tile_e=128, tile_dst=8)
    jax.block_until_ready(out)

    ref = mul_layer_ref(src_idx, dst_idx, src_emb, dst_emb, edge_emb)
    assert out.shape == ref.shape, "shape mismatch vs reference"
    # msg is rounded to bf16 for the MXU operand; accumulation stays f32,
    # so tolerance is relaxed from 1e-5 to 2e-2 as recommended.
    assert jnp.allclose(out, ref, atol=2e-2, rtol=2e-2), "mismatch vs reference"

    print("KERNEL_OK")
</pallas_src>

<mosaic_0001>
module attributes {stable_mosaic.version = 11 : i64} {
  func.func @_scatter_mean_kernel(%arg0: i32, %arg1: i32, %arg2: memref<6xi32, #tpu.memory_space<smem>>, %arg3: memref<2xi32, #tpu.memory_space<smem>>, %arg4: memref<2xi32, #tpu.memory_space<smem>>, %arg5: memref<1x128xi32, #tpu.memory_space<vmem>>, %arg6: memref<128x128xbf16, #tpu.memory_space<vmem>>, %arg7: memref<8x128xf32, #tpu.memory_space<vmem>>, %arg8: memref<8x1xf32, #tpu.memory_space<vmem>>, %arg9: memref<8x1xf32, #tpu.memory_space<vmem>>, %arg10: memref<8x128xf32, #tpu.memory_space<vmem>>) attributes {dimension_semantics = [#tpu.dimension_semantics<parallel>, #tpu.dimension_semantics<arbitrary>], iteration_bounds = array<i64: 2, 3>, scalar_prefetch = 3 : i64, scratch_operands = 0 : i64, tpu.core_type = #tpu.core_type<tc>, window_params = [{transform_indices = @transform_0, window_bounds = array<i64: 1, 128>}, {transform_indices = @transform_1, window_bounds = array<i64: 128, 128>}, {transform_indices = @transform_2, window_bounds = array<i64: 8, 128>}, {transform_indices = @transform_3, window_bounds = array<i64: 8, 1>}, {transform_indices = @transform_4, window_bounds = array<i64: 8, 1>}, {transform_indices = @transform_5, window_bounds = array<i64: 8, 128>}]} {
    %c0_i32 = arith.constant 0 : i32
    %0 = arith.cmpi eq, %arg1, %c0_i32 : i32
    %1 = arith.extui %0 : i1 to i32
    %c0_i32_0 = arith.constant 0 : i32
    %2 = arith.cmpi ne, %1, %c0_i32_0 : i32
    scf.if %2 {
      %cst = arith.constant 0.000000e+00 : f32
      %13 = vector.broadcast %cst : f32 to vector<8x128xf32>
      %c0 = arith.constant 0 : index
      %c0_4 = arith.constant 0 : index
      %14 = vector.load %arg10[%c0, %c0_4] : memref<8x128xf32, #tpu.memory_space<vmem>>, vector<8x128xf32>
      tpu.vector_store %arg10[%c0, %c0_4], %13 {strides = array<i32>} : memref<8x128xf32, #tpu.memory_space<vmem>>, vector<8x128xf32>,
    } else {
    }
    %c3_i32 = arith.constant 3 : i32
    %3 = arith.muli %arg0, %c3_i32 : i32
    %4 = arith.addi %3, %arg1 : i32
    %5 = arith.index_cast %4 : i32 to index
    %6 = memref.load %arg2[%5] : memref<6xi32, #tpu.memory_space<smem>>
    %c0_i32_1 = arith.constant 0 : i32
    %7 = arith.cmpi sgt, %6, %c0_i32_1 : i32
    %8 = arith.extui %7 : i1 to i32
    %c0_i32_2 = arith.constant 0 : i32
    %9 = arith.cmpi ne, %8, %c0_i32_2 : i32
    scf.if %9 {
      %c8_i32 = arith.constant 8 : i32
      %13 = arith.muli %arg0, %c8_i32 : i32
      %c0 = arith.constant 0 : index
      %c0_4 = arith.constant 0 : index
      %14 = vector.load %arg5[%c0, %c0_4] : memref<1x128xi32, #tpu.memory_space<vmem>>, vector<1x128xi32>
      %15 = vector.broadcast %13 : i32 to vector<1x128xi32>
      %16 = arith.subi %14, %15 : vector<1x128xi32>
      %17 = tpu.iota {dimensions = array<i32: 0>} : vector<8x128xi32>
      %18 = vector.broadcast %16 : vector<1x128xi32> to vector<8x128xi32>
      %19 = arith.cmpi eq, %17, %18 : vector<8x128xi32>
      %20 = arith.extui %19 : vector<8x128xi1> to vector<8x128xi32>
      %21 = arith.sitofp %20 : vector<8x128xi32> to vector<8x128xf32>
      %22 = arith.truncf %21 : vector<8x128xf32> to vector<8x128xbf16>
      %c0_5 = arith.constant 0 : index
      %c0_6 = arith.constant 0 : index
      %23 = vector.load %arg10[%c0_5, %c0_6] : memref<8x128xf32, #tpu.memory_space<vmem>>, vector<8x128xf32>
      %c0_7 = arith.constant 0 : index
      %c0_8 = arith.constant 0 : index
      %24 = vector.load %arg6[%c0_7, %c0_8] : memref<128x128xbf16, #tpu.memory_space<vmem>>, vector<128x128xbf16>
      %cst = arith.constant dense<0.000000e+00> : vector<8x128xf32>
      %25 = tpu.matmul %22, %24, %cst {dimension_numbers = #tpu.dot_dimension_numbers<[1], [0], [0], [1], [0, 0, 1, 1], [], []>} : vector<8x128xbf16>, vector<128x128xbf16>, vector<8x128xf32> -> vector<8x128xf32>
      %26 = arith.addf %23, %25 : vector<8x128xf32>
      %c0_9 = arith.constant 0 : index
      %c0_10 = arith.constant 0 : index
      %27 = vector.load %arg10[%c0_9, %c0_10] : memref<8x128xf32, #tpu.memory_space<vmem>>, vector<8x128xf32>
      tpu.vector_store %arg10[%c0_9, %c0_10], %26 {strides = array<i32>} : memref<8x128xf32, #tpu.memory_space<vmem>>, vector<8x128xf32>,
    } else {
    }
    %c2_i32 = arith.constant 2 : i32
    %10 = arith.cmpi eq, %arg1, %c2_i32 : i32
    %11 = arith.extui %10 : i1 to i32
    %c0_i32_3 = arith.constant 0 : i32
    %12 = arith.cmpi ne, %11, %c0_i32_3 : i32
    scf.if %12 {
      %c0 = arith.constant 0 : index
      %c0_4 = arith.constant 0 : index
      %13 = vector.load %arg8[%c0, %c0_4] : memref<8x1xf32, #tpu.memory_space<vmem>>, vector<8x1xf32>
      %c0_5 = arith.constant 0 : index
      %c0_6 = arith.constant 0 : index
      %14 = vector.load %arg7[%c0_5, %c0_6] : memref<8x128xf32, #tpu.memory_space<vmem>>, vector<8x128xf32>
      %15 = vector.broadcast %13 : vector<8x1xf32> to vector<8x128xf32>
      %16 = arith.mulf %15, %14 : vector<8x128xf32>
      %c0_7 = arith.constant 0 : index
      %c0_8 = arith.constant 0 : index
      %17 = vector.load %arg9[%c0_7, %c0_8] : memref<8x1xf32, #tpu.memory_space<vmem>>, vector<8x1xf32>
      %c0_9 = arith.constant 0 : index
      %c0_10 = arith.constant 0 : index
      %18 = vector.load %arg10[%c0_9, %c0_10] : memref<8x128xf32, #tpu.memory_space<vmem>>, vector<8x128xf32>
      %19 = vector.broadcast %17 : vector<8x1xf32> to vector<8x128xf32>
      %20 = arith.mulf %19, %18 : vector<8x128xf32>
      %21 = arith.addf %16, %20 : vector<8x128xf32>
      %c0_11 = arith.constant 0 : index
      %c0_12 = arith.constant 0 : index
      %22 = vector.load %arg10[%c0_11, %c0_12] : memref<8x128xf32, #tpu.memory_space<vmem>>, vector<8x128xf32>
      tpu.vector_store %arg10[%c0_11, %c0_12], %21 {strides = array<i32>} : memref<8x128xf32, #tpu.memory_space<vmem>>, vector<8x128xf32>,
    } else {
    }
    return
  }
  func.func @transform_0(%arg0: i32, %arg1: i32, %arg2: memref<6xi32, #tpu.memory_space<smem>>, %arg3: memref<2xi32, #tpu.memory_space<smem>>, %arg4: memref<2xi32, #tpu.memory_space<smem>>) -> (i32, i32) {
    %0 = arith.index_cast %arg0 : i32 to index
    %1 = memref.load %arg3[%0] : memref<2xi32, #tpu.memory_space<smem>>
    %2 = arith.index_cast %arg0 : i32 to index
    %3 = memref.load %arg4[%2] : memref<2xi32, #tpu.memory_space<smem>>
    %4 = arith.maxsi %1, %arg1 : i32
    %5 = arith.minsi %3, %4 : i32
    %c0_i32 = arith.constant 0 : i32
    %c0_i32_0 = arith.constant 0 : i32
    return %c0_i32, %5 : i32, i32
  }
  func.func @transform_1(%arg0: i32, %arg1: i32, %arg2: memref<6xi32, #tpu.memory_space<smem>>, %arg3: memref<2xi32, #tpu.memory_space<smem>>, %arg4: memref<2xi32, #tpu.memory_space<smem>>) -> (i32, i32) {
    %0 = arith.index_cast %arg0 : i32 to index
    %1 = memref.load %arg3[%0] : memref<2xi32, #tpu.memory_space<smem>>
    %2 = arith.index_cast %arg0 : i32 to index
    %3 = memref.load %arg4[%2] : memref<2xi32, #tpu.memory_space<smem>>
    %4 = arith.maxsi %1, %arg1 : i32
    %5 = arith.minsi %3, %4 : i32
    %c0_i32 = arith.constant 0 : i32
    %c0_i32_0 = arith.constant 0 : i32
    return %5, %c0_i32 : i32, i32
  }
  func.func @transform_2(%arg0: i32, %arg1: i32, %arg2: memref<6xi32, #tpu.memory_space<smem>>, %arg3: memref<2xi32, #tpu.memory_space<smem>>, %arg4: memref<2xi32, #tpu.memory_space<smem>>) -> (i32, i32) {
    %c0_i32 = arith.constant 0 : i32
    %c0_i32_0 = arith.constant 0 : i32
    return %arg0, %c0_i32 : i32, i32
  }
  func.func @transform_3(%arg0: i32, %arg1: i32, %arg2: memref<6xi32, #tpu.memory_space<smem>>, %arg3: memref<2xi32, #tpu.memory_space<smem>>, %arg4: memref<2xi32, #tpu.memory_space<smem>>) -> (i32, i32) {
    %c0_i32 = arith.constant 0 : i32
    %c0_i32_0 = arith.constant 0 : i32
    return %arg0, %c0_i32 : i32, i32
  }
  func.func @transform_4(%arg0: i32, %arg1: i32, %arg2: memref<6xi32, #tpu.memory_space<smem>>, %arg3: memref<2xi32, #tpu.memory_space<smem>>, %arg4: memref<2xi32, #tpu.memory_space<smem>>) -> (i32, i32) {
    %c0_i32 = arith.constant 0 : i32
    %c0_i32_0 = arith.constant 0 : i32
    return %arg0, %c0_i32 : i32, i32
  }
  func.func @transform_5(%arg0: i32, %arg1: i32, %arg2: memref<6xi32, #tpu.memory_space<smem>>, %arg3: memref<2xi32, #tpu.memory_space<smem>>, %arg4: memref<2xi32, #tpu.memory_space<smem>>) -> (i32, i32) {
    %c0_i32 = arith.constant 0 : i32
    %c0_i32_0 = arith.constant 0 : i32
    return %arg0, %c0_i32 : i32, i32
  }
}

</mosaic_0001>

<llo_original>
// kernel: tpu_custom_call.1
$region0: #{tpu_custom_call.1}
  #allocation0 [shape = 'u32[]', space=smem, size = 0x4, offset = 0x4, fixed_abs, tag = 'smem constant byte address 0x4 - core index']
  #allocation1 [shape = 'u32[144,128]{1,0:T(1,128)}', space=vmem, size = 0x12000, scoped, tag = 'internal scratch']
  #allocation2 [shape = 's32[1]{0}', space=sflag, size = 0x4, scoped, tag = 'scoped memory for tpu_custom_call.1']
  #allocation3 [shape = 'u8[512]{0}', space=smem, size = 0x200, scoped, tag = 'prefetched SMEM operand 0']
  #allocation4 [shape = 'u8[512]{0}', space=smem, size = 0x200, scoped, tag = 'prefetched SMEM operand 1']
  #allocation5 [shape = 'u8[512]{0}', space=smem, size = 0x200, scoped, tag = 'prefetched SMEM operand 2']
  %s0 = inlined_call_operand.vmem [shape: s32[6], index: 0, kind: input, shape index: {}]
  %s1 = inlined_call_operand.vmem [shape: s32[2], index: 1, kind: input, shape index: {}]
  %s2 = inlined_call_operand.vmem [shape: s32[2], index: 2, kind: input, shape index: {}]
  %s3 = inlined_call_operand.vmem [shape: s32[1,384], index: 3, kind: input, shape index: {}]
  %s4 = inlined_call_operand.hbm [shape: bf16[384,128], index: 4, kind: input, shape index: {}]
  %s5 = inlined_call_operand.vmem [shape: f32[16,128], index: 5, kind: input, shape index: {}]
  %s6 = inlined_call_operand.vmem [shape: f32[16,1], index: 6, kind: input, shape index: {}]
  %s7 = inlined_call_operand.vmem [shape: f32[16,1], index: 7, kind: input, shape index: {}]
  %s8 = inlined_call_operand.hbm [shape: f32[16,128], index: 8, kind: output, shape index: {}]
  %s9 = sld [smem:[#allocation0]]
  $region69: #{tpu_custom_call.1} parent=0
    _
  %s11 = ssub.s32 1, %s9
  %s12 = scalar_select 0, %s11, %s9
  %s13 = sshll.u32 %s0, 4
  %s14 = int_to_ptr.vmem [resolvable:$true] %s13
  %16 = dma.vmem_to_smem %s14, 16, [#allocation3], [#allocation2]
  %s17 = sshll.u32 %s1, 4
  %s18 = int_to_ptr.vmem [resolvable:$true] %s17
  %20 = dma.vmem_to_smem %s18, 16, [#allocation4], [#allocation2]
  %s21 = sshll.u32 %s2, 4
  %s22 = int_to_ptr.vmem [resolvable:$true] %s21
  %24 = dma.vmem_to_smem %s22, 16, [#allocation5], [#allocation2]
  %25 = dma.done [#allocation2], 48
  %26 = sfence
  $region1: #{tpu_custom_call.1} parent=0
    #allocation6 [shape = 'u8[65536]{0}', space=vmem, size = 0x10000, scoped, tag = 'input window, operand 4']
    #allocation7 [shape = 's32[2]{0}', space=sflag, size = 0x8, scoped, tag = 'scoped memory for tpu_custom_call.1']
    #allocation8 [shape = 's32[2]{0}', space=sflag, size = 0x8, scoped, tag = 'scoped memory for tpu_custom_call.1']
    #allocation9 [shape = 'u8[8192]{0}', space=vmem, size = 0x2000, scoped, tag = 'output window, operand 0']
    %27 = vsyncpa [#allocation7], 0
    %s28 = scalar_lea.sflag [#allocation7], 1
    %29 = vsyncpa %s28, 0
    %30 = vsyncpa [#allocation8], 0
    %s31 = scalar_lea.sflag [#allocation8], 1
    %32 = vsyncpa %s31, 0
    loop: start=0, step=1, limit=8
    $region2: #{tpu_custom_call.1} parent=1 // loop_pre_header
      _
    $region3: #{tpu_custom_call.1} parent=1 // loop_header
      %s34 = sphi 0, %s38
      %p35 = scmp.ge.s32.totalorder %s34, 8
      %s41 = sphi 0, %s53
      %s42 = sphi 0, %s49
      %s43 = sphi 0, %s41
      %s44 = sphi 0, %s42
      %s45 = sphi 0, %s43
      %s46 = sphi 0, %s44
      %s68 = sphi 0, %s70
      %s71 = sphi 0, %s68
      %s72 = sphi 0, %s71
      %s88 = sphi 0, %s72
      %s106 = sphi 0, %s108
      %s109 = sphi 0, %s106
      %s110 = sphi 0, %s109
      %s126 = sphi 0, %s110
      %s132 = sphi 0, %s134
      %s135 = sphi 0, %s132
      %s136 = sphi 0, %s135
      %s152 = sphi 0, %s136
      %s158 = sphi 0, %s160
      %s161 = sphi 0, %s158
      %s162 = sphi 0, %s161
      %s178 = sphi 0, %s162
      %s184 = sphi 0, %s186
      %s187 = sphi 0, %s184
      %s188 = sphi 0, %s187
      %s204 = sphi 0, %s188
      %s210 = sphi 0, %s212
      %s213 = sphi 0, %s210
      %s214 = sphi 0, %s213
      %s230 = sphi 0, %s214
    $region4: #{tpu_custom_call.1} parent=1 // loop_header_branch
      %37 = sbr.rel (%p35) target = $region8
    $region5: #{tpu_custom_call.1} parent=1 // loop_body
      %s39 = ssub.s32 %s34, 1
      %s40 = ssub.s32 %s34, 2
      %s47 = sadd.s32 1, %s42
      %p48 = scmp.ge.s32.totalorder %s47, 3
      %s49 = scalar_select %p48, 0, %s47
      %s50 = sadd.s32 1, %s41
      %s51 = scalar_select %p48, %s50, %s41
      %p52 = scmp.ge.s32.totalorder %s51, 2
      %s53 = scalar_select %p52, 0, %s51
      %s54 = sld [smem:[#allocation4 + %s41]]
      %s55 = sld [smem:[#allocation5 + %s41]]
      %p56 = scmp.gt.s32.totalorder %s54, %s42
      %s57 = scalar_select %p56, %s54, %s42
      %p58 = scmp.lt.s32.totalorder %s55, %s57
      %s59 = scalar_select %p58, %s55, %s57
      %s60 = sld [smem:[#allocation4 + %s53]]
      %s61 = sld [smem:[#allocation5 + %s53]]
      %p62 = scmp.gt.s32.totalorder %s60, %s49
      %s63 = scalar_select %p62, %s60, %s49
      %p64 = scmp.lt.s32.totalorder %s61, %s63
      %s65 = scalar_select %p64, %s61, %s63
      %s66 = ssub.s32 %s59, %s65
      %p67 = scmp.eq.s32.totalorder %s66, 0
      %s69 = sadd.s32 %s68, 1
      %s70 = scalar_select %p67, %s68, %s69
      %p73 = pneg %p67
      %p74 = scmp.eq.s32.totalorder %s34, 5
      %p75 = por %p73, %p74
      %p76 = scmp.ne.s32.totalorder %s68, %s71
      %p77 = scmp.eq.s32.totalorder %s34, 0
      %p78 = por %p76, %p77
      %p79 = scmp.ne.s32.totalorder %s68, %s71
      %p80 = scmp.eq.s32.totalorder %s39, 5
      %p81 = por %p79, %p80
      %p82 = scmp.ne.s32.totalorder %s71, %s72
      %p83 = scmp.eq.s32.totalorder %s39, 0
      %p84 = por %p82, %p83
      %p85 = scmp.ne.s32.totalorder %s71, %s72
      %p86 = scmp.eq.s32.totalorder %s40, 5
      %p87 = por %p85, %p86
      %p89 = scmp.ne.s32.totalorder %s72, %s88
      %p90 = scmp.eq.s32.totalorder %s40, 0
      %p91 = por %p89, %p90
      %s92 = sld [smem:[#allocation4 + %s41]]
      %s93 = sld [smem:[#allocation5 + %s41]]
      %p94 = scmp.gt.s32.totalorder %s92, %s42
      %s95 = scalar_select %p94, %s92, %s42
      %p96 = scmp.lt.s32.totalorder %s93, %s95
      %s97 = scalar_select %p96, %s93, %s95
      %s98 = sld [smem:[#allocation4 + %s53]]
      %s99 = sld [smem:[#allocation5 + %s53]]
      %p100 = scmp.gt.s32.totalorder %s98, %s49
      %s101 = scalar_select %p100, %s98, %s49
      %p102 = scmp.lt.s32.totalorder %s99, %s101
      %s103 = scalar_select %p102, %s99, %s101
      %s104 = ssub.s32 %s97, %s103
      %p105 = scmp.eq.s32.totalorder %s104, 0
      %s107 = sadd.s32 %s106, 1
      %s108 = scalar_select %p105, %s106, %s107
      %p111 = pneg %p105
      %p112 = scmp.eq.s32.totalorder %s34, 5
      %p113 = por %p111, %p112
      %p114 = scmp.ne.s32.totalorder %s106, %s109
      %p115 = scmp.eq.s32.totalorder %s34, 0
      %p116 = por %p114, %p115
      %p117 = scmp.ne.s32.totalorder %s106, %s109
      %p118 = scmp.eq.s32.totalorder %s39, 5
      %p119 = por %p117, %p118
      %p120 = scmp.ne.s32.totalorder %s109, %s110
      %p121 = scmp.eq.s32.totalorder %s39, 0
      %p122 = por %p120, %p121
      %p123 = scmp.ne.s32.totalorder %s109, %s110
      %p124 = scmp.eq.s32.totalorder %s40, 5
      %p125 = por %p123, %p124
      %p127 = scmp.ne.s32.totalorder %s110, %s126
      %p128 = scmp.eq.s32.totalorder %s40, 0
      %p129 = por %p127, %p128
      %s130 = ssub.s32 %s41, %s53
      %p131 = scmp.eq.s32.totalorder %s130, 0
      %s133 = sadd.s32 %s132, 1
      %s134 = scalar_select %p131, %s132, %s133
      %p137 = pneg %p131
      %p138 = scmp.eq.s32.totalorder %s34, 5
      %p139 = por %p137, %p138
      %p140 = scmp.ne.s32.totalorder %s132, %s135
      %p141 = scmp.eq.s32.totalorder %s34, 0
      %p142 = por %p140, %p141
      %p143 = scmp.ne.s32.totalorder %s132, %s135
      %p144 = scmp.eq.s32.totalorder %s39, 5
      %p145 = por %p143, %p144
      %p146 = scmp.ne.s32.totalorder %s135, %s136
      %p147 = scmp.eq.s32.totalorder %s39, 0
      %p148 = por %p146, %p147
      %p149 = scmp.ne.s32.totalorder %s135, %s136
      %p150 = scmp.eq.s32.totalorder %s40, 5
      %p151 = por %p149, %p150
      %p153 = scmp.ne.s32.totalorder %s136, %s152
      %p154 = scmp.eq.s32.totalorder %s40, 0
      %p155 = por %p153, %p154
      %s156 = ssub.s32 %s41, %s53
      %p157 = scmp.eq.s32.totalorder %s156, 0
      %s159 = sadd.s32 %s158, 1
      %s160 = scalar_select %p157, %s158, %s159
      %p163 = pneg %p157
      %p164 = scmp.eq.s32.totalorder %s34, 5
      %p165 = por %p163, %p164
      %p166 = scmp.ne.s32.totalorder %s158, %s161
      %p167 = scmp.eq.s32.totalorder %s34, 0
      %p168 = por %p166, %p167
      %p169 = scmp.ne.s32.totalorder %s158, %s161
      %p170 = scmp.eq.s32.totalorder %s39, 5
      %p171 = por %p169, %p170
      %p172 = scmp.ne.s32.totalorder %s161, %s162
      %p173 = scmp.eq.s32.totalorder %s39, 0
      %p174 = por %p172, %p173
      %p175 = scmp.ne.s32.totalorder %s161, %s162
      %p176 = scmp.eq.s32.totalorder %s40, 5
      %p177 = por %p175, %p176
      %p179 = scmp.ne.s32.totalorder %s162, %s178
      %p180 = scmp.eq.s32.totalorder %s40, 0
      %p181 = por %p179, %p180
      %s182 = ssub.s32 %s41, %s53
      %p183 = scmp.eq.s32.totalorder %s182, 0
      %s185 = sadd.s32 %s184, 1
      %s186 = scalar_select %p183, %s184, %s185
      %p189 = pneg %p183
      %p190 = scmp.eq.s32.totalorder %s34, 5
      %p191 = por %p189, %p190
      %p192 = scmp.ne.s32.totalorder %s184, %s187
      %p193 = scmp.eq.s32.totalorder %s34, 0
      %p194 = por %p192, %p193
      %p195 = scmp.ne.s32.totalorder %s184, %s187
      %p196 = scmp.eq.s32.totalorder %s39, 5
      %p197 = por %p195, %p196
      %p198 = scmp.ne.s32.totalorder %s187, %s188
      %p199 = scmp.eq.s32.totalorder %s39, 0
      %p200 = por %p198, %p199
      %p201 = scmp.ne.s32.totalorder %s187, %s188
      %p202 = scmp.eq.s32.totalorder %s40, 5
      %p203 = por %p201, %p202
      %p205 = scmp.ne.s32.totalorder %s188, %s204
      %p206 = scmp.eq.s32.totalorder %s40, 0
      %p207 = por %p205, %p206
      %s208 = ssub.s32 %s41, %s53
      %p209 = scmp.eq.s32.totalorder %s208, 0
      %s211 = sadd.s32 %s210, 1
      %s212 = scalar_select %p209, %s210, %s211
      %p215 = pneg %p209
      %p216 = scmp.eq.s32.totalorder %s34, 5
      %p217 = por %p215, %p216
      %p218 = scmp.ne.s32.totalorder %s210, %s213
      %p219 = scmp.eq.s32.totalorder %s34, 0
      %p220 = por %p218, %p219
      %p221 = scmp.ne.s32.totalorder %s210, %s213
      %p222 = scmp.eq.s32.totalorder %s39, 5
      %p223 = por %p221, %p222
      %p224 = scmp.ne.s32.totalorder %s213, %s214
      %p225 = scmp.eq.s32.totalorder %s39, 0
      %p226 = por %p224, %p225
      %p227 = scmp.ne.s32.totalorder %s213, %s214
      %p228 = scmp.eq.s32.totalorder %s40, 5
      %p229 = por %p227, %p228
      %p231 = scmp.ne.s32.totalorder %s214, %s230
      %p232 = scmp.eq.s32.totalorder %s40, 0
      %p233 = por %p231, %p232
      %p234 = scmp.le.s32.totalorder 1, %s34
      %p235 = scmp.lt.s32.totalorder %s34, 7
      %p236 = pnand %p234, %p235
      %p237 = pneg %p236
      // Predicated region
      $region9: #{tpu_custom_call.1} parent=5 // pred_check
        _
      $region10: #{tpu_custom_call.1} parent=5 // pred_check_branch
        %239 = sbr.rel (%p236) target = $region12
      $region11: #{tpu_custom_call.1} parent=5 // pred_region
        %s240 = ssub.s32 %s34, 1
      $region12: #{tpu_custom_call.1} parent=5 // pred_fallthru
        _
      %p241 = scmp.lt.s32.totalorder %s34, 6
      // Predicated region
      $region13: #{tpu_custom_call.1} parent=5 // pred_check
        %p242 = pneg %p241
      $region14: #{tpu_custom_call.1} parent=5 // pred_check_branch
        %244 = sbr.rel (%p242) target = $region16
      $region15: #{tpu_custom_call.1} parent=5 // pred_region
        // Predicated region
        $region17: #{tpu_custom_call.1} parent=15 // pred_check
          %p245 = pneg %p78
        $region18: #{tpu_custom_call.1} parent=15 // pred_check_branch
          %247 = sbr.rel (%p245) target = $region20
        $region19: #{tpu_custom_call.1} parent=15 // pred_region
          %s248 = sld [smem:[#allocation4 + %s41]]
          %s249 = sld [smem:[#allocation5 + %s41]]
          %p250 = scmp.gt.s32.totalorder %s248, %s42
          %s251 = scalar_select %p250, %s248, %s42
          %p252 = scmp.lt.s32.totalorder %s249, %s251
          %s253 = scalar_select %p252, %s249, %s251
          %p254 = scmp.lt.s32.totalorder %s253, 2
          %s255 = scalar_select %p254, %s253, 2
          %s256 = scalar_lea.vmem %s3, %s255
          %s257 = sld [smem:[#allocation4 + %s41]]
          %s258 = sld [smem:[#allocation5 + %s41]]
          %p259 = scmp.gt.s32.totalorder %s257, %s42
          %s260 = scalar_select %p259, %s257, %s42
          %p261 = scmp.lt.s32.totalorder %s258, %s260
          %s262 = scalar_select %p261, %s258, %s260
        $region20: #{tpu_custom_call.1} parent=15 // pred_fallthru
          _
        // Predicated region
        $region21: #{tpu_custom_call.1} parent=15 // pred_check
          %p263 = pneg %p116
        $region22: #{tpu_custom_call.1} parent=15 // pred_check_branch
          %265 = sbr.rel (%p263) target = $region24
        $region23: #{tpu_custom_call.1} parent=15 // pred_region
          %s266 = sand.u32 %s106, 1
          %s267 = scalar_lea.sflag [#allocation7], %s266
          %s268 = sand.u32 %s106, 1
          %s269 = smul.addr %s268, 64
          %s270 = scalar_lea.vmem [#allocation6], %s269
          %s271 = sld [smem:[#allocation4 + %s41]]
          %s272 = sld [smem:[#allocation5 + %s41]]
          %p273 = scmp.gt.s32.totalorder %s271, %s42
          %s274 = scalar_select %p273, %s271, %s42
          %p275 = scmp.lt.s32.totalorder %s272, %s274
          %s276 = scalar_select %p275, %s272, %s274
          %s277 = smul.u32 16, %s276
          %s279 = ssub.s32 1024, 1024
          %280 = vsyncadd %s267, %s279
          %s281 = smul.addr %s277, 64
          %s282 = scalar_lea.hbm %s4, %s281
          %s283 = sshll.u32 %s270, 4
          %s284 = int_to_ptr.vmem [resolvable:$true] %s283
          %289 = dma.hbm_to_vmem [thread:$0]  %s282, 1024, %s284, %s267, 64, 64, 4
        $region24: #{tpu_custom_call.1} parent=15 // pred_fallthru
          _
        // Predicated region
        $region25: #{tpu_custom_call.1} parent=15 // pred_check
          %p290 = pneg %p142
        $region26: #{tpu_custom_call.1} parent=15 // pred_check_branch
          %292 = sbr.rel (%p290) target = $region28
        $region27: #{tpu_custom_call.1} parent=15 // pred_region
          %p293 = scmp.lt.s32.totalorder %s41, 1
          %s294 = scalar_select %p293, %s41, 1
          %s295 = smul.addr %s294, 8
          %s296 = scalar_lea.vmem %s5, %s295
        $region28: #{tpu_custom_call.1} parent=15 // pred_fallthru
          _
        // Predicated region
        $region29: #{tpu_custom_call.1} parent=15 // pred_check
          %p297 = pneg %p168
        $region30: #{tpu_custom_call.1} parent=15 // pred_check_branch
          %299 = sbr.rel (%p297) target = $region32
        $region31: #{tpu_custom_call.1} parent=15 // pred_region
          %p300 = scmp.lt.s32.totalorder %s41, 1
          %s301 = scalar_select %p300, %s41, 1
          %s302 = smul.addr %s301, 8
          %s303 = scalar_lea.vmem %s6, %s302
        $region32: #{tpu_custom_call.1} parent=15 // pred_fallthru
          _
        // Predicated region
        $region33: #{tpu_custom_call.1} parent=15 // pred_check
          %p304 = pneg %p194
        $region34: #{tpu_custom_call.1} parent=15 // pred_check_branch
          %306 = sbr.rel (%p304) target = $region36
        $region35: #{tpu_custom_call.1} parent=15 // pred_region
          %p307 = scmp.lt.s32.totalorder %s41, 1
          %s308 = scalar_select %p307, %s41, 1
          %s309 = smul.addr %s308, 8
          %s310 = scalar_lea.vmem %s7, %s309
        $region36: #{tpu_custom_call.1} parent=15 // pred_fallthru
          _
      $region16: #{tpu_custom_call.1} parent=5 // pred_fallthru
        _
      %p311 = scmp.le.s32.totalorder 1, %s34
      %p312 = scmp.lt.s32.totalorder %s34, 7
      %p313 = pnand %p311, %p312
      %p314 = pneg %p313
      // Predicated region
      $region37: #{tpu_custom_call.1} parent=5 // pred_check
        _
      $region38: #{tpu_custom_call.1} parent=5 // pred_check_branch
        %316 = sbr.rel (%p313) target = $region40
      $region39: #{tpu_custom_call.1} parent=5 // pred_region
        %s317 = ssub.s32 %s34, 1
        %s318 = sand.u32 %s109, 1
        %s319 = scalar_lea.sflag [#allocation7], %s318
        %s320 = sand.u32 %s109, 1
        %s321 = smul.addr %s320, 64
        %s322 = scalar_lea.vmem [#allocation6], %s321
        // Predicated region
        $region41: #{tpu_custom_call.1} parent=39 // pred_check
          %p323 = pneg %p122
        $region42: #{tpu_custom_call.1} parent=39 // pred_check_branch
          %325 = sbr.rel (%p323) target = $region44
        $region43: #{tpu_custom_call.1} parent=39 // pred_region
          %326 = dma.done %s319, 1024
        $region44: #{tpu_custom_call.1} parent=39 // pred_fallthru
          _
        %s327 = sld [smem:[#allocation4 + %s43]]
        %s328 = sld [smem:[#allocation5 + %s43]]
        %p329 = scmp.gt.s32.totalorder %s327, %s44
        %s330 = scalar_select %p329, %s327, %s44
        %p331 = scmp.lt.s32.totalorder %s328, %s330
        %s332 = scalar_select %p331, %s328, %s330
        %p333 = scmp.lt.s32.totalorder %s332, 2
        %s334 = scalar_select %p333, %s332, 2
        %s335 = scalar_lea.vmem %s3, %s334
        %p336 = pneg %p84
        %p337 = pneg %p81
        %s338 = sand.u32 %s109, 1
        %s339 = scalar_lea.sflag [#allocation7], %s338
        %s340 = sand.u32 %s109, 1
        %s341 = smul.addr %s340, 64
        %s342 = scalar_lea.vmem [#allocation6], %s341
        %p343 = pneg %p122
        %p344 = pneg %p119
        %p345 = scmp.lt.s32.totalorder %s43, 1
        %s346 = scalar_select %p345, %s43, 1
        %s347 = smul.addr %s346, 8
        %s348 = scalar_lea.vmem %s5, %s347
        %p349 = pneg %p148
        %p350 = pneg %p145
        %p351 = scmp.lt.s32.totalorder %s43, 1
        %s352 = scalar_select %p351, %s43, 1
        %s353 = smul.addr %s352, 8
        %s354 = scalar_lea.vmem %s6, %s353
        %p355 = pneg %p174
        %p356 = pneg %p171
        %p357 = scmp.lt.s32.totalorder %s43, 1
        %s358 = scalar_select %p357, %s43, 1
        %s359 = smul.addr %s358, 8
        %s360 = scalar_lea.vmem %s7, %s359
        %p361 = pneg %p200
        %p362 = pneg %p197
        %p363 = pneg %p226
        %p364 = pneg %p223
        %s365 = sand.u32 %s213, 1
        %s366 = scalar_lea.sflag [#allocation8], %s365
        %s367 = sand.u32 %s213, 1
        %s368 = smul.addr %s367, 8
        %s369 = scalar_lea.vmem [#allocation9], %s368
        %s370 = sld [smem:[#allocation4 + %s43]]
        %s371 = sld [smem:[#allocation5 + %s43]]
        %p372 = scmp.gt.s32.totalorder %s370, %s44
        %s373 = scalar_select %p372, %s370, %s44
        %p374 = scmp.lt.s32.totalorder %s371, %s373
        %s375 = scalar_select %p374, %s371, %s373
        %p376 = scmp.lt.s32.totalorder %s375, 2
        %s377 = scalar_select %p376, %s375, 2
        %s378 = scalar_lea.vmem %s3, %s377
        %s379 = sld [smem:[#allocation4 + %s43]]
        %s380 = sld [smem:[#allocation5 + %s43]]
        %p381 = scmp.gt.s32.totalorder %s379, %s44
        %s382 = scalar_select %p381, %s379, %s44
        %p383 = scmp.lt.s32.totalorder %s380, %s382
        %s384 = scalar_select %p383, %s380, %s382
        %s385 = sld [smem:[#allocation4 + %s43]]
        %s386 = sld [smem:[#allocation5 + %s43]]
        %p387 = scmp.gt.s32.totalorder %s385, %s44
        %s388 = scalar_select %p387, %s385, %s44
        %p389 = scmp.lt.s32.totalorder %s386, %s388
        %s390 = scalar_select %p389, %s386, %s388
        %s391 = smul.u32 16, %s390
        %p392 = scmp.lt.s32.totalorder %s43, 1
        %s393 = scalar_select %p392, %s43, 1
        %s394 = smul.addr %s393, 8
        %s395 = scalar_lea.vmem %s5, %s394
        %p396 = scmp.lt.s32.totalorder %s43, 1
        %s397 = scalar_select %p396, %s43, 1
        %s398 = smul.addr %s397, 8
        %s399 = scalar_lea.vmem %s6, %s398
        %p400 = scmp.lt.s32.totalorder %s43, 1
        %s401 = scalar_select %p400, %s43, 1
        %s402 = smul.addr %s401, 8
        %s403 = scalar_lea.vmem %s7, %s402
        %p405 = scmp.eq.s32.totalorder %s44, 0
        // Predicated region
        $region45: #{tpu_custom_call.1} parent=39 // pred_check
          %p406 = pneg %p405
        $region46: #{tpu_custom_call.1} parent=39 // pred_check_branch
          %408 = sbr.rel (%p406) target = $region48
        $region47: #{tpu_custom_call.1} parent=39 // pred_region
          %409 = vst [vmem:[%s369] sm:$0xff] 0.0
        $region48: #{tpu_custom_call.1} parent=39 // pred_fallthru
          _
        %s410 = smul.u32 %s43, 3
        %s411 = sadd.s32 %s410, %s44
        %s412 = sld [smem:[#allocation3 + %s411]]
        %p413 = scmp.gt.s32.totalorder %s412, 0
        // Predicated region
        $region49: #{tpu_custom_call.1} parent=39 // pred_check
          %p414 = pneg %p413
        $region50: #{tpu_custom_call.1} parent=39 // pred_check_branch
          %416 = sbr.rel (%p414) target = $region52
        $region51: #{tpu_custom_call.1} parent=39 // pred_region
          %s417 = smul.u32 %s43, 8
          %v418 = vld [vmem:[%s378] sm:$0x1]
          %v419 = vstv %s417
          %v420 = vsub.s32 %v418, %v419
          %v421 = vlaneseq
          %v422 = vshrl.u32 %v421, 7
          %v423 = vlaneseq
          %v424 = vshrl.u32 %v423, 7
          %v425 = vsub.s32 0, %v424
          %v426 = vrot.slane %v420, %v425
          %vm427 = vcmp.eq.s32.totalorder %v422, %v426
          %v428 = vsel %vm427, 1, 0
          %v429 = vcvt.s32.f32 %v428
          %v430 = vpack.c.bf16 %v429, %v429
          %v431 = vld [vmem:[%s369] sm:$0xff]
          %v432 = vld [vmem:[%s322] sm:$0xf]
          %v433 = vld [vmem:[%s322 + $0x4] sm:$0xf]
          %v434 = vld [vmem:[%s322 + $0x8] sm:$0xf]
          %v435 = vld [vmem:[%s322 + $0xc] sm:$0xf]
          %v436 = vld [vmem:[%s322 + $0x10] sm:$0xf]
          %v437 = vld [vmem:[%s322 + $0x14] sm:$0xf]
          %v438 = vld [vmem:[%s322 + $0x18] sm:$0xf]
          %v439 = vld [vmem:[%s322 + $0x1c] sm:$0xf]
          %v440 = vld [vmem:[%s322 + $0x20] sm:$0xf]
          %v441 = vld [vmem:[%s322 + $0x24] sm:$0xf]
          %v442 = vld [vmem:[%s322 + $0x28] sm:$0xf]
          %v443 = vld [vmem:[%s322 + $0x2c] sm:$0xf]
          %v444 = vld [vmem:[%s322 + $0x30] sm:$0xf]
          %v445 = vld [vmem:[%s322 + $0x34] sm:$0xf]
          %v446 = vld [vmem:[%s322 + $0x38] sm:$0xf]
          %v447 = vld [vmem:[%s322 + $0x3c] sm:$0xf]
          %v464 = vunpack.c.l.b16 %v432
          %v465 = vunpack.c.l.b16 %v433
          %v466 = vunpack.c.l.b16 %v434
          %v467 = vunpack.c.l.b16 %v435
          %v468 = vunpack.c.l.b16 %v436
          %v469 = vunpack.c.l.b16 %v437
          %v470 = vunpack.c.l.b16 %v438
          %v471 = vunpack.c.l.b16 %v439
          %v472 = vunpack.c.l.b16 %v440
          %v473 = vunpack.c.l.b16 %v441
          %v474 = vunpack.c.l.b16 %v442
          %v475 = vunpack.c.l.b16 %v443
          %v476 = vunpack.c.l.b16 %v444
          %v477 = vunpack.c.l.b16 %v445
          %v478 = vunpack.c.l.b16 %v446
          %v479 = vunpack.c.l.b16 %v447
          %v480 = vpack.c.b16 %v465, %v464
          %v481 = vpack.c.b16 %v467, %v466
          %v482 = vpack.c.b16 %v469, %v468
          %v483 = vpack.c.b16 %v471, %v470
          %v484 = vpack.c.b16 %v473, %v472
          %v485 = vpack.c.b16 %v475, %v474
          %v486 = vpack.c.b16 %v477, %v476
          %v487 = vpack.c.b16 %v479, %v478
          %496 = vmatprep.subr.bf16.mxu0 0
          %497 = vmatpush1.bf16.msra.mxu0 %v480
          %498 = vmatprep.subr.bf16.mxu0 0
          %499 = vmatpush1.bf16.msra.mxu0 %v481
          %500 = vmatprep.subr.bf16.mxu0 0
          %501 = vmatpush1.bf16.msra.mxu0 %v482
          %502 = vmatprep.subr.bf16.mxu0 0
          %503 = vmatpush1.bf16.msra.mxu0 %v483
          %504 = vmatprep.subr.bf16.mxu0 0
          %505 = vmatpush1.bf16.msra.mxu0 %v484
          %506 = vmatprep.subr.bf16.mxu0 0
          %507 = vmatpush1.bf16.msra.mxu0 %v485
          %508 = vmatprep.subr.bf16.mxu0 0
          %509 = vmatpush1.bf16.msra.mxu0 %v486
          %510 = vmatprep.subr.bf16.mxu0 0
          %511 = vmatpush1.bf16.msra.mxu0 %v487
          %512 = vmatprep.subr.bf16.mxu0 0
          %513 = vmatpush1.bf16.msra.mxu0 0
          %514 = vmatprep.subr.bf16.mxu0 0
          %515 = vmatpush1.bf16.msra.mxu0 0
          %516 = vmatprep.subr.bf16.mxu0 0
          %517 = vmatpush1.bf16.msra.mxu0 0
          %518 = vmatprep.subr.bf16.mxu0 0
          %519 = vmatpush1.bf16.msra.mxu0 0
          %520 = vmatprep.subr.bf16.mxu0 0
          %521 = vmatpush1.bf16.msra.mxu0 0
          %522 = vmatprep.subr.bf16.mxu0 0
          %523 = vmatpush1.bf16.msra.mxu0 0
          %524 = vmatprep.subr.bf16.mxu0 0
          %525 = vmatpush1.bf16.msra.mxu0 0
          %526 = vmatprep.subr.bf16.mxu0 0
          %527 = vmatpush1.bf16.msra.mxu0 0
          %528 = vmatprep.mubr.bf16.mxu0 0
          %529 = vmatmul.mubr.bf16.gmra.mrb[0].mxu0 %v430
          %v530 = vpop.f32.mrb[0].mxu0
          %v531 = vadd.f32 0.0, %v530
          %v532 = vpop.f32.mrb[0].mxu0
          %v533 = vpop.f32.mrb[0].mxu0
          %v534 = vpop.f32.mrb[0].mxu0
          %535 = vdwg.mxu0
          %v536 = vadd.f32 %v431, %v531
          %537 = vst [vmem:[%s369] sm:$0xff] %v536
        $region52: #{tpu_custom_call.1} parent=39 // pred_fallthru
          _
        %p538 = scmp.eq.s32.totalorder %s44, 2
        // Predicated region
        $region53: #{tpu_custom_call.1} parent=39 // pred_check
          %p539 = pneg %p538
        $region54: #{tpu_custom_call.1} parent=39 // pred_check_branch
          %541 = sbr.rel (%p539) target = $region56
        $region55: #{tpu_custom_call.1} parent=39 // pred_region
          %v542 = vld [vmem:[%s399] sm:$0xff]
          %v543 = vld [vmem:[%s395] sm:$0xff]
          %545 = vset.pattern.permute.xlu0 0
          %546 = vperm.xlu0 %545, %v542
          %v547 = vpop.permute.xlu0 %546
          %v549 = vmul.f32 %v547, %v543
          %v550 = vld [vmem:[%s403] sm:$0xff]
          %v551 = vld [vmem:[%s369] sm:$0xff]
          %553 = vset.pattern.permute.xlu0 0
          %554 = vperm.xlu0 %553, %v550
          %v555 = vpop.permute.xlu0 %554
          %v557 = vmul.f32 %v555, %v551
          %v558 = vadd.f32 %v549, %v557
          %559 = vst [vmem:[%s369] sm:$0xff] %v558
        $region56: #{tpu_custom_call.1} parent=39 // pred_fallthru
          _
        %s560 = sand.u32 %s213, 1
        %s561 = scalar_lea.sflag [#allocation8], %s560
        %s562 = sand.u32 %s213, 1
        %s563 = smul.addr %s562, 8
        %s564 = scalar_lea.vmem [#allocation9], %s563
        // Predicated region
        $region57: #{tpu_custom_call.1} parent=39 // pred_check
          %p565 = pneg %p223
        $region58: #{tpu_custom_call.1} parent=39 // pred_check_branch
          %567 = sbr.rel (%p565) target = $region60
        $region59: #{tpu_custom_call.1} parent=39 // pred_region
          %s569 = ssub.s32 128, 128
          %570 = vsyncadd %s561, %s569
          %s571 = smul.addr %s43, 128
          %s572 = scalar_lea.hbm %s8, %s571
          %s574 = sshll.u32 %s564, 4
          %s575 = int_to_ptr.vmem [resolvable:$true] %s574
          %577 = dma.vmem_to_hbm [thread:$0]  %s575, 128, %s572, %s561
        $region60: #{tpu_custom_call.1} parent=39 // pred_fallthru
          _
      $region40: #{tpu_custom_call.1} parent=5 // pred_fallthru
        _
      %p578 = scmp.le.s32.totalorder 2, %s34
      // Predicated region
      $region61: #{tpu_custom_call.1} parent=5 // pred_check
        %p579 = pneg %p578
      $region62: #{tpu_custom_call.1} parent=5 // pred_check_branch
        %581 = sbr.rel (%p579) target = $region64
      $region63: #{tpu_custom_call.1} parent=5 // pred_region
        %s582 = ssub.s32 %s34, 2
        // Predicated region
        $region65: #{tpu_custom_call.1} parent=63 // pred_check
          %p583 = pneg %p229
        $region66: #{tpu_custom_call.1} parent=63 // pred_check_branch
          %585 = sbr.rel (%p583) target = $region68
        $region67: #{tpu_custom_call.1} parent=63 // pred_region
          %s586 = sand.u32 %s214, 1
          %s587 = scalar_lea.sflag [#allocation8], %s586
          %s588 = sand.u32 %s214, 1
          %s589 = smul.addr %s588, 8
          %s590 = scalar_lea.vmem [#allocation9], %s589
          %591 = dma.done %s587, 128
        $region68: #{tpu_custom_call.1} parent=63 // pred_fallthru
          _
      $region64: #{tpu_custom_call.1} parent=5 // pred_fallthru
        _
    $region6: #{tpu_custom_call.1} parent=1 // loop_footer
      %s38 = sadd.s32 1, %s34
    $region7: #{tpu_custom_call.1} parent=1 // loop_footer_branch
      %33 = sbr.rel target = $region3
    $region8: #{tpu_custom_call.1} parent=1 // loop_exit
      _
    %592 = vsyncpa [#allocation7], 1
    %s593 = scalar_lea.sflag [#allocation7], 1
    %594 = vsyncpa %s593, 1
    %595 = vsyncpa [#allocation8], 1
    %s596 = scalar_lea.sflag [#allocation8], 1
    %597 = vsyncpa %s596, 1

</llo_original>
